<compile_context>
chip_gen: v5e
topology: v5e:2x2
jax: 0.10.0
libtpu: 0.0.40
codegen_flags: <defaults>
</compile_context>

<pallas_src>
import jax
import jax.numpy as jnp
from jax.experimental import pallas as pl
from jax.experimental.pallas import tpu as pltpu


def _dma_copy_kernel(x_hbm, o_hbm, sem):
    # A view implies at most a bulk copy: one direct HBM->HBM DMA, no VMEM staging.
    cp = pltpu.make_async_copy(x_hbm, o_hbm, sem)
    cp.start()
    cp.wait()


def _resolve_shape(total_per_batch, shape):
    """Resolve a torch.view-style shape (one -1 allowed) for the non-batch dims."""
    shape = tuple(int(s) for s in shape)
    if shape.count(-1) > 1:
        raise ValueError("only one -1 allowed in view shape")
    if -1 in shape:
        known = 1
        for s in shape:
            if s != -1:
                known *= s
        if known == 0 or total_per_batch % known != 0:
            raise ValueError("cannot infer -1 dimension")
        shape = tuple(total_per_batch // known if s == -1 else s for s in shape)
    prod = 1
    for s in shape:
        prod *= s
    if prod != total_per_batch:
        raise ValueError("view shape incompatible with input size")
    return shape


def _pallas_hbm_copy(x_flat):
    """Copy an (N, F) slab with a single direct HBM->HBM DMA (no VMEM round-trip)."""
    n, total = x_flat.shape
    itemsize = jnp.dtype(x_flat.dtype).itemsize
    return pl.pallas_call(
        _dma_copy_kernel,
        out_shape=jax.ShapeDtypeStruct((n, total), x_flat.dtype),
        # Both refs stay in HBM; the kernel body drives the DMA engine directly.
        in_specs=[pl.BlockSpec(memory_space=pl.ANY)],
        out_specs=pl.BlockSpec(memory_space=pl.ANY),
        scratch_shapes=[pltpu.SemaphoreType.DMA(())],
        # Pure memory-bound copy: read + write the full slab once each.
        cost_estimate=pl.CostEstimate(
            flops=0,
            transcendentals=0,
            bytes_accessed=2 * n * total * itemsize,
        ),
    )(x_flat)


def view_forward(x, *shape, use_pallas_copy=False, donate=False):
    """Pallas/JAX implementation of View(*shape).forward(x)."""
    n = x.shape[0]
    total = 1
    for d in x.shape[1:]:
        total *= d
    out_shape = _resolve_shape(total, shape)

    if donate or not use_pallas_copy:
        # Hot path (and donated path): .view() is metadata-only. No kernel,
        # no HBM traffic. Aliasing + an identity copy would still cost 2x slab
        # bytes, so a donating caller gets the free reshape instead.
        return jnp.reshape(x, (n,) + out_shape)

    # Optional explicit-copy path (kept for demonstration / benchmarking).
    x_flat = jnp.reshape(x, (n, total))           # metadata-only, matches torch row-major
    y_flat = _pallas_hbm_copy(x_flat)             # one HBM->HBM DMA
    return jnp.reshape(y_flat, (n,) + out_shape)  # metadata-only


if __name__ == "__main__":
    key = jax.random.PRNGKey(0)
    # NCHW input, as the discriminator would feed it: batch=2, C=4, H=W=16.
    x = jax.random.normal(key, (2, 4, 16, 16), dtype=jnp.float32)

    # Default hot path: metadata-only reshape (no Pallas kernel launched).
    y0 = jax.block_until_ready(view_forward(x, -1))
    assert y0.shape == (2, 4 * 16 * 16)

    # Donated path: also metadata-only, no copy kernel.
    yd = jax.block_until_ready(view_forward(x, -1, use_pallas_copy=True, donate=True))
    assert yd.shape == (2, 1024)

    # Pallas HBM->HBM copy path, exercised once for each view pattern.
    y1 = jax.block_until_ready(view_forward(x, -1, use_pallas_copy=True))
    y2 = jax.block_until_ready(view_forward(x, 16, 64, use_pallas_copy=True))
    assert y1.shape == (2, 1024)
    assert y2.shape == (2, 16, 64)

    # Correctness vs. plain reshape (torch .view on contiguous == row-major reshape).
    ref_flat = jnp.reshape(x, (2, -1))
    assert bool(jnp.all(y0 == ref_flat))
    assert bool(jnp.all(yd == ref_flat))
    assert bool(jnp.all(y1 == ref_flat))
    assert bool(jnp.all(y2 == jnp.reshape(x, (2, 16, 64))))

    print("KERNEL_OK")
</pallas_src>

<mosaic_0001>
module attributes {stable_mosaic.version = 11 : i64} {
  func.func @_dma_copy_kernel(%arg0: memref<2x1024xf32, #tpu.memory_space<any>>, %arg1: memref<2x1024xf32, #tpu.memory_space<any>>, %arg2: memref<!tpu.dma_semaphore, #tpu.memory_space<semaphore_mem>>) attributes {dimension_semantics = [], scalar_prefetch = 0 : i64, scratch_operands = 1 : i64, tpu.core_type = #tpu.core_type<tc>} {
    tpu.enqueue_dma source(%arg0 : memref<2x1024xf32, #tpu.memory_space<any>>) target(%arg1 : memref<2x1024xf32, #tpu.memory_space<any>>) target_semaphore(%arg2 : memref<!tpu.dma_semaphore, #tpu.memory_space<semaphore_mem>>)
    tpu.wait_dma2 semaphore(%arg2 : memref<!tpu.dma_semaphore, #tpu.memory_space<semaphore_mem>>) src(%arg0 : memref<2x1024xf32, #tpu.memory_space<any>>) dst(%arg1 : memref<2x1024xf32, #tpu.memory_space<any>>)
    return
  }
}

</mosaic_0001>

<llo_original>
// kernel: tpu_custom_call.1
$region0: #{tpu_custom_call.1}
  #allocation0 [shape = 'u32[]', space=smem, size = 0x4, offset = 0x4, fixed_abs, tag = 'smem constant byte address 0x4 - core index']
  #allocation1 [shape = 'u32[72,128]{1,0:T(1,128)}', space=vmem, size = 0x9000, scoped, tag = 'internal scratch']
  #allocation2 [shape = 's32[1]{0}', space=sflag, size = 0x4, scoped, tag = 'scratch operand']
  #allocation3 [shape = 's32[]', space=sflag, size = 0x4, offset = 0, fixed_abs, tag = 'sflag constant byte address 0x0 - dummy sync flag']
  #allocation4 [shape = 'u32[0]{0}', space=smem, size = 0, offset = 0, fixed_abs, tag = 'smem constant byte address 0x0 - null']
  %s0 = inlined_call_operand.hbm [shape: f32[2,1024], index: 0, kind: input, shape index: {}]
  %s1 = inlined_call_operand.hbm [shape: f32[2,1024], index: 1, kind: output, shape index: {}]
  %s2 = sld [smem:[#allocation0]]
  $region2: #{tpu_custom_call.1} parent=0
    _
  %s4 = ssub.s32 1, %s2
  %s5 = scalar_select 0, %s4, %s2
  %s7 = sshll.u32 1, 14
  %s8 = sxor.u32 4294967295, %s7
  %s10 = sshll.u32 %s0, 4
  %s11 = int_to_ptr.hbm [resolvable:$true] %s10
  %s12 = sshll.u32 %s1, 4
  %s13 = int_to_ptr.hbm [resolvable:$true] %s12
  %16 = dma.general %s11, 256, %s13, [#allocation2], [#allocation3], [#allocation4], 0, 0
  %s17 = smul.u32 2, 1
  %s18 = smul.u32 %s17, 8
  %s19 = sshll.u32 %s18, 4
  %20 = dma.done [#allocation2], %s19
  %21 = vsyncmov [#allocation2]
  %s22 = vpop.sfrf %21
  %p23 = scmp.eq.s32.totalorder %s22, 0
  %p24 = pneg %p23
  %26 = shalt.err (%p24)

</llo_original>
